<compile_context>
chip_gen: v7x
topology: tpu7x:2x2x1
jax: 0.10.0
libtpu: 0.0.40
codegen_flags: <defaults>
</compile_context>

<pallas_src>
import math
import functools

import jax
import jax.numpy as jnp
from jax.experimental import pallas as pl
from jax.experimental.pallas import tpu as pltpu


# ----------------------------- helpers -----------------------------

def _round_up(x, m):
    return ((x + m - 1) // m) * m


def _pad2(a, rows, cols):
    return jnp.pad(a, ((0, rows - a.shape[0]), (0, cols - a.shape[1])))


def _pick_tile(n_pad, pref):
    """Largest multiple of 128 <= pref that divides n_pad (n_pad is a multiple of 128)."""
    t = min(pref, n_pad)
    while n_pad % t != 0:
        t -= 128
    return t


_VMEM_LIMIT = 64 * 1024 * 1024  # explicit headroom; tiles are sized to fit v7x's 64 MiB VMEM


# ----------------------------- Pallas kernels -----------------------------

def _linear_kernel(x_ref, w_ref, b_ref, o_ref, *, relu):
    # y = x @ W + b   (optionally ReLU). Row-tiled; K (nfeat) is small for GraphPPIS so W is
    # kept fully resident (would add a K grid axis + accumulator if nfeat were large).
    y = jnp.dot(x_ref[...], w_ref[...], preferred_element_type=jnp.float32)
    y = y + b_ref[...]
    if relu:
        y = jnp.maximum(y, 0.0)
    o_ref[...] = y


def _gcn_kernel(adj_ref, xk_ref, xi_ref, h0_ref, *rest,
                alpha, theta, variant, fuse_final):
    """One GraphConvolution layer (residual=True) fused with ReLU (+ optional classifier).

    Grid = (row_tiles, k_tiles); k is the contraction axis of hi = adj @ x.
      adj_ref : (TM, TK)  block (i, k)
      xk_ref  : (TK, H)   block (k, 0)   -> matmul RHS
      xi_ref  : (TM, H)   block (i, 0)   -> residual add
      h0_ref  : (TM, H)   block (i, 0)
      weights : wt [, wb] [, wf, bf]     (full, resident across the grid)
      o_ref   : (TM, H) or (TM, C)       written only on the last k step
      acc_ref : (TM, H) f32 scratch accumulator
    """
    rest = list(rest)
    wt_ref = rest.pop(0)
    wb_ref = rest.pop(0) if variant else None
    wf_ref = rest.pop(0) if fuse_final else None
    bf_ref = rest.pop(0) if fuse_final else None
    o_ref, acc_ref = rest

    k = pl.program_id(1)
    nk = pl.num_programs(1)

    @pl.when(k == 0)
    def _init():
        acc_ref[...] = jnp.zeros_like(acc_ref)

    # hi_partial += adj_tile @ x_tile   (MXU, f32 accumulation)
    acc_ref[...] += jnp.dot(adj_ref[...], xk_ref[...],
                            preferred_element_type=jnp.float32)

    @pl.when(k == nk - 1)
    def _epilogue():
        hi = acc_ref[...]                               # f32 (TM, H)
        h0 = h0_ref[...]
        r = (1.0 - alpha) * hi + alpha * h0.astype(jnp.float32)
        mxu_dt = wt_ref.dtype
        if variant:
            # support = [hi, h0] @ W  ==  hi @ W_top + h0 @ W_bot   (no concat / relayout)
            sup = jnp.dot(hi.astype(mxu_dt), wt_ref[...],
                          preferred_element_type=jnp.float32)
            sup = sup + jnp.dot(h0, wb_ref[...],
                                preferred_element_type=jnp.float32)
        else:
            sup = jnp.dot(r.astype(mxu_dt), wt_ref[...],
                          preferred_element_type=jnp.float32)
        out = theta * sup + (1.0 - theta) * r + xi_ref[...].astype(jnp.float32)
        out = jnp.maximum(out, 0.0)                      # act_fn
        if fuse_final:
            # fcs[-1] fused into the last layer's epilogue (dropout is identity in eval).
            logits = jnp.dot(out.astype(mxu_dt), wf_ref[...],
                             preferred_element_type=jnp.float32)
            o_ref[...] = logits + bf_ref[...]
        else:
            o_ref[...] = out


# ----------------------------- pallas_call wrappers -----------------------------

def linear(x, w, b, *, relu, tm=256):
    """Row-tiled y = x @ W + b (all dims already padded to multiples of 128)."""
    Np, Fp = x.shape
    Hp = w.shape[1]
    tm = _pick_tile(Np, tm)
    kernel = functools.partial(_linear_kernel, relu=bool(relu))
    return pl.pallas_call(
        kernel,
        out_shape=jax.ShapeDtypeStruct((Np, Hp), jnp.float32),
        grid_spec=pltpu.PrefetchScalarGridSpec(
            num_scalar_prefetch=0,
            grid=(Np // tm,),
            in_specs=[pl.BlockSpec((tm, Fp), lambda i: (i, 0)),
                      pl.BlockSpec((Fp, Hp), lambda i: (0, 0)),
                      pl.BlockSpec((1, Hp), lambda i: (0, 0))],
            out_specs=pl.BlockSpec((tm, Hp), lambda i: (i, 0)),
        ),
        compiler_params=pltpu.CompilerParams(
            dimension_semantics=("parallel",),
            vmem_limit_bytes=_VMEM_LIMIT,
        ),
    )(x, w, b)


def gcn_layer(adj, h, h0, ws, *, alpha, theta, variant, final=None, tm=256, tk=512):
    """One fused GCN layer. `ws` = (W,) or (W_top, W_bot); `final` = (W_cls, b_cls) or None."""
    Np = adj.shape[0]
    Hp = h.shape[1]
    tm = _pick_tile(Np, tm)
    tk = _pick_tile(Np, tk)
    grid = (Np // tm, Np // tk)

    in_specs = [
        pl.BlockSpec((tm, tk), lambda i, k: (i, k)),   # adj block
        pl.BlockSpec((tk, Hp), lambda i, k: (k, 0)),   # h rows for adj @ h
        pl.BlockSpec((tm, Hp), lambda i, k: (i, 0)),   # h rows for residual
        pl.BlockSpec((tm, Hp), lambda i, k: (i, 0)),   # h0
    ]
    inputs = [adj, h, h, h0]
    for w in ws:
        in_specs.append(pl.BlockSpec(w.shape, lambda i, k: (0, 0)))
        inputs.append(w)
    if final is not None:
        wf, bf = final
        in_specs.append(pl.BlockSpec(wf.shape, lambda i, k: (0, 0)))
        in_specs.append(pl.BlockSpec(bf.shape, lambda i, k: (0, 0)))
        inputs += [wf, bf]
        out_cols = wf.shape[1]
    else:
        out_cols = Hp

    kernel = functools.partial(
        _gcn_kernel, alpha=float(alpha), theta=float(theta),
        variant=bool(variant), fuse_final=final is not None)

    return pl.pallas_call(
        kernel,
        out_shape=jax.ShapeDtypeStruct((Np, out_cols), jnp.float32),
        grid_spec=pltpu.PrefetchScalarGridSpec(
            num_scalar_prefetch=0,
            grid=grid,
            in_specs=in_specs,
            out_specs=pl.BlockSpec((tm, out_cols), lambda i, k: (i, 0)),
            scratch_shapes=[pltpu.VMEM((tm, Hp), jnp.float32)],
        ),
        compiler_params=pltpu.CompilerParams(
            dimension_semantics=("parallel", "arbitrary"),
            vmem_limit_bytes=_VMEM_LIMIT,
        ),
    )(*inputs)


# ----------------------------- model -----------------------------

def init_deep_gcn_params(key, nlayers, nfeat, nhidden, nclass, variant):
    """Deterministic parameter init mirroring the PyTorch shapes (unpadded)."""
    params = {}
    k = key

    def uniform(kk, shape, bound):
        return jax.random.uniform(kk, shape, jnp.float32, minval=-bound, maxval=bound)

    k, k1, k2 = jax.random.split(k, 3)
    bound0 = 1.0 / math.sqrt(nfeat)
    params["fc0_w"] = uniform(k1, (nfeat, nhidden), bound0)
    params["fc0_b"] = uniform(k2, (nhidden,), bound0)

    in_features = 2 * nhidden if variant else nhidden
    stdv = 1.0 / math.sqrt(nhidden)
    conv_ws = []
    for _ in range(nlayers):
        k, kw = jax.random.split(k)
        conv_ws.append(uniform(kw, (in_features, nhidden), stdv))
    params["conv_ws"] = conv_ws

    k, k3, k4 = jax.random.split(k, 3)
    bound1 = 1.0 / math.sqrt(nhidden)
    params["fc1_w"] = uniform(k3, (nhidden, nclass), bound1)
    params["fc1_b"] = uniform(k4, (nclass,), bound1)
    return params


def deep_gcn_forward(params, x, adj, *, lamda, alpha, variant,
                     compute_dtype=jnp.float32, tm=256, tk=512):
    """deepGCN forward (eval mode).  compute_dtype=jnp.bfloat16 enables the bf16 MXU path
    (f32 accumulation) on v6e/v7x; f32 keeps bit-tight numerics."""
    N, nfeat = x.shape
    H = params["fc0_w"].shape[1]
    C = params["fc1_w"].shape[1]

    # 128-lane / 128-row padding (zero padding is stable: padded rows/cols never feed valid ones).
    Np = _round_up(max(N, 1), 128)
    Fp = _round_up(nfeat, 128)
    Hp = _round_up(H, 128)
    Cp = _round_up(C, 128)

    cdt = compute_dtype
    x_p = _pad2(x, Np, Fp).astype(cdt)
    adj_p = _pad2(adj, Np, Np).astype(cdt)

    w0 = _pad2(params["fc0_w"], Fp, Hp).astype(cdt)
    b0 = _pad2(params["fc0_b"].reshape(1, -1), 1, Hp).astype(jnp.float32)
    w1 = _pad2(params["fc1_w"], Hp, Cp).astype(cdt)
    b1 = _pad2(params["fc1_b"].reshape(1, -1), 1, Cp).astype(jnp.float32)

    conv_ws = []
    for w in params["conv_ws"]:
        if variant:
            # Split W so the kernel avoids the [N, 2H] concatenate.
            conv_ws.append((_pad2(w[:H], Hp, Hp).astype(cdt),
                            _pad2(w[H:], Hp, Hp).astype(cdt)))
        else:
            conv_ws.append((_pad2(w, Hp, Hp).astype(cdt),))

    # dropout(training=False) -> identity
    h = linear(x_p, w0, b0, relu=True, tm=tm)          # act_fn(fcs[0](x))
    h0 = h                                             # _layers[0]

    L = len(conv_ws)
    out = None
    for i, ws in enumerate(conv_ws):
        l = i + 1
        theta = min(1.0, math.log(lamda / l + 1.0))
        is_last = (i == L - 1)
        res = gcn_layer(adj_p, h.astype(cdt), h0.astype(cdt), ws,
                        alpha=alpha, theta=theta, variant=variant,
                        final=(w1, b1) if is_last else None, tm=tm, tk=tk)
        if is_last:
            out = res                                  # classifier fused into last layer
        else:
            h = res
    if out is None:                                    # nlayers == 0 fallback
        out = linear(h.astype(cdt), w1, b1, relu=False, tm=tm)

    return out[:N, :C]


# ----------------------------- pure-JAX reference -----------------------------

def deep_gcn_reference(params, x, adj, *, lamda, alpha, variant):
    h = jnp.maximum(x @ params["fc0_w"] + params["fc0_b"], 0.0)
    h0 = h
    for i, w in enumerate(params["conv_ws"]):
        l = i + 1
        theta = min(1.0, math.log(lamda / l + 1.0))
        hi = adj @ h
        if variant:
            support = jnp.concatenate([hi, h0], axis=1)
            r = (1.0 - alpha) * hi + alpha * h0
        else:
            support = (1.0 - alpha) * hi + alpha * h0
            r = support
        out = theta * (support @ w) + (1.0 - theta) * r + h
        h = jnp.maximum(out, 0.0)
    return h @ params["fc1_w"] + params["fc1_b"]


# ----------------------------- main -----------------------------

if __name__ == "__main__":
    # Small, deterministic example. Tiles forced to 128 so the (row, k) grid has multiple
    # steps and the accumulator / pl.when paths are exercised.
    N = 200
    nfeat = 16
    nhidden = 32
    nclass = 2
    nlayers = 4
    lamda = 1.5
    alpha = 0.1

    key = jax.random.PRNGKey(0)
    k_p1, k_p2, k_x, k_adj = jax.random.split(key, 4)

    x = jax.random.normal(k_x, (N, nfeat), jnp.float32)

    # Deterministic symmetric row-normalized adjacency (dense stand-in for spmm).
    a = jax.random.uniform(k_adj, (N, N), jnp.float32)
    a = (a + a.T) * 0.5 + jnp.eye(N, dtype=jnp.float32)
    adj = a / jnp.sum(a, axis=1, keepdims=True)

    # f32 path: check both variant=True and variant=False against the pure-JAX reference.
    for variant, kp in ((True, k_p1), (False, k_p2)):
        params = init_deep_gcn_params(kp, nlayers, nfeat, nhidden, nclass, variant)
        out = deep_gcn_forward(params, x, adj, lamda=lamda, alpha=alpha,
                               variant=variant, tm=128, tk=128)
        out = jax.block_until_ready(out)
        ref = deep_gcn_reference(params, x, adj, lamda=lamda, alpha=alpha, variant=variant)
        assert out.shape == (N, nclass), out.shape
        err = float(jnp.max(jnp.abs(out - ref)))
        assert err < 1e-3, f"variant={variant} max abs err {err}"

    # bf16 MXU path (v6e/v7x lever): verify it compiles/runs and stays finite.
    params = init_deep_gcn_params(k_p1, nlayers, nfeat, nhidden, nclass, True)
    out_bf16 = deep_gcn_forward(params, x, adj, lamda=lamda, alpha=alpha,
                                variant=True, compute_dtype=jnp.bfloat16, tm=128, tk=128)
    out_bf16 = jax.block_until_ready(out_bf16)
    assert out_bf16.shape == (N, nclass)
    assert bool(jnp.all(jnp.isfinite(out_bf16)))

    print("KERNEL_OK")
</pallas_src>

<mosaic_0001>
module attributes {stable_mosaic.version = 11 : i64} {
  func.func @_linear_kernel(%arg0: i32, %arg1: memref<128x128xf32, #tpu.memory_space<vmem>>, %arg2: memref<128x128xf32, #tpu.memory_space<vmem>>, %arg3: memref<1x128xf32, #tpu.memory_space<vmem>>, %arg4: memref<128x128xf32, #tpu.memory_space<vmem>>) attributes {dimension_semantics = [#tpu.dimension_semantics<parallel>], iteration_bounds = array<i64: 2>, scalar_prefetch = 0 : i64, scratch_operands = 0 : i64, tpu.core_type = #tpu.core_type<tc>, window_params = [{transform_indices = @transform_0, window_bounds = array<i64: 128, 128>}, {pipeline_mode = #tpu.pipeline_mode<synchronous>, transform_indices = @transform_1, window_bounds = array<i64: 128, 128>}, {pipeline_mode = #tpu.pipeline_mode<synchronous>, transform_indices = @transform_2, window_bounds = array<i64: 1, 128>}, {transform_indices = @transform_3, window_bounds = array<i64: 128, 128>}]} {
    %c0 = arith.constant 0 : index
    %c0_0 = arith.constant 0 : index
    %0 = vector.load %arg1[%c0, %c0_0] : memref<128x128xf32, #tpu.memory_space<vmem>>, vector<128x128xf32>
    %c0_1 = arith.constant 0 : index
    %c0_2 = arith.constant 0 : index
    %1 = vector.load %arg2[%c0_1, %c0_2] : memref<128x128xf32, #tpu.memory_space<vmem>>, vector<128x128xf32>
    %cst = arith.constant dense<0.000000e+00> : vector<128x128xf32>
    %2 = tpu.matmul %0, %1, %cst {dimension_numbers = #tpu.dot_dimension_numbers<[1], [0], [0], [1], [0, 0, 1, 1], [], []>} : vector<128x128xf32>, vector<128x128xf32>, vector<128x128xf32> -> vector<128x128xf32>
    %c0_3 = arith.constant 0 : index
    %c0_4 = arith.constant 0 : index
    %3 = vector.load %arg3[%c0_3, %c0_4] : memref<1x128xf32, #tpu.memory_space<vmem>>, vector<1x128xf32>
    %4 = vector.broadcast %3 : vector<1x128xf32> to vector<128x128xf32>
    %5 = arith.addf %2, %4 : vector<128x128xf32>
    %cst_5 = arith.constant 0.000000e+00 : f32
    %6 = vector.broadcast %cst_5 : f32 to vector<128x128xf32>
    %7 = arith.maximumf %5, %6 : vector<128x128xf32>
    %c0_6 = arith.constant 0 : index
    %c0_7 = arith.constant 0 : index
    %8 = vector.load %arg4[%c0_6, %c0_7] : memref<128x128xf32, #tpu.memory_space<vmem>>, vector<128x128xf32>
    tpu.vector_store %arg4[%c0_6, %c0_7], %7 {strides = array<i32>} : memref<128x128xf32, #tpu.memory_space<vmem>>, vector<128x128xf32>,
    return
  }
  func.func @transform_0(%arg0: i32) -> (i32, i32) {
    %c0_i32 = arith.constant 0 : i32
    %c0_i32_0 = arith.constant 0 : i32
    return %arg0, %c0_i32 : i32, i32
  }
  func.func @transform_1(%arg0: i32) -> (i32, i32) {
    %c0_i32 = arith.constant 0 : i32
    %c0_i32_0 = arith.constant 0 : i32
    %c0_i32_1 = arith.constant 0 : i32
    return %c0_i32, %c0_i32_0 : i32, i32
  }
  func.func @transform_2(%arg0: i32) -> (i32, i32) {
    %c0_i32 = arith.constant 0 : i32
    %c0_i32_0 = arith.constant 0 : i32
    %c0_i32_1 = arith.constant 0 : i32
    return %c0_i32, %c0_i32_0 : i32, i32
  }
  func.func @transform_3(%arg0: i32) -> (i32, i32) {
    %c0_i32 = arith.constant 0 : i32
    %c0_i32_0 = arith.constant 0 : i32
    return %arg0, %c0_i32 : i32, i32
  }
}

</mosaic_0001>

<llo_original>
// kernel: tpu_custom_call.1
$region0: #{tpu_custom_call.1}
  #allocation0 [shape = 'u32[]', space=smem, size = 0x4, offset = 0x4, fixed_abs, tag = 'smem constant byte address 0x4 - core index']
  #allocation1 [shape = 'u32[144,128]{1,0:T(1,128)}', space=vmem, size = 0x12000, scoped, tag = 'internal scratch']
  %s0 = inlined_call_operand.hbm [shape: f32[256,128], index: 0, kind: input, shape index: {}]
  %s1 = inlined_call_operand.hbm [shape: f32[128,128], index: 1, kind: input, shape index: {}]
  %s2 = inlined_call_operand.hbm [shape: f32[1,128], index: 2, kind: input, shape index: {}]
  %s3 = inlined_call_operand.hbm [shape: f32[256,128], index: 3, kind: output, shape index: {}]
  %s4 = sld [smem:[#allocation0]]
  $region57: #{tpu_custom_call.1} parent=0
    _
  %s6 = ssub.s32 1, %s4
  %s7 = scalar_select 0, %s6, %s4
  $region1: #{tpu_custom_call.1} parent=0
    #allocation2 [shape = 'u8[131072]{0}', space=vmem, size = 0x20000, scoped, tag = 'input window, operand 0']
    #allocation3 [shape = 's32[2]{0}', space=sflag, size = 0x8, scoped, tag = 'scoped memory for tpu_custom_call.1']
    #allocation4 [shape = 's32[2]{0}', space=sflag, size = 0x8, scoped, tag = 'scoped memory for tpu_custom_call.1']
    #allocation5 [shape = 'u8[65536]{0}', space=vmem, size = 0x10000, scoped, tag = 'input window, operand 1, single buffered']
    #allocation6 [shape = 's32[1]{0}', space=sflag, size = 0x4, scoped, tag = 'scoped memory for tpu_custom_call.1']
    #allocation7 [shape = 'u8[512]{0}', space=vmem, size = 0x400, scoped, tag = 'input window, operand 2, single buffered']
    #allocation8 [shape = 'u8[131072]{0}', space=vmem, size = 0x20000, scoped, tag = 'output window, operand 0']
    %8 = vsyncpa [#allocation3], 0
    %s9 = scalar_lea.sflag [#allocation3], 1
    %10 = vsyncpa %s9, 0
    %11 = vsyncpa [#allocation6], 0
    %12 = vsyncpa [#allocation4], 0
    %s13 = scalar_lea.sflag [#allocation4], 1
    %14 = vsyncpa %s13, 0
    loop: start=0, step=1, limit=4
    $region2: #{tpu_custom_call.1} parent=1 // loop_pre_header
      _
    $region3: #{tpu_custom_call.1} parent=1 // loop_header
      %s16 = sphi 0, %s20
      %p17 = scmp.ge.s32.totalorder %s16, 4
      %s26 = sphi 0, %s28
      %s29 = sphi 0, %s26
      %s30 = sphi 0, %s29
      %s46 = sphi 0, %s30
      %s50 = sphi 0, %s50
      %s52 = sphi 0, %s50
      %s53 = sphi 0, %s52
      %s67 = sphi 0, %s53
      %s71 = sphi 0, %s71
      %s73 = sphi 0, %s71
      %s74 = sphi 0, %s73
      %s88 = sphi 0, %s74
      %s94 = sphi 0, %s96
      %s97 = sphi 0, %s94
      %s98 = sphi 0, %s97
      %s114 = sphi 0, %s98
    $region4: #{tpu_custom_call.1} parent=1 // loop_header_branch
      %19 = sbr.rel (%p17) target = $region8
    $region5: #{tpu_custom_call.1} parent=1 // loop_body
      %s21 = ssub.s32 %s16, 1
      %s22 = ssub.s32 %s16, 2
      %s23 = sadd.s32 %s16, 1
      %s24 = ssub.s32 %s16, %s23
      %p25 = scmp.eq.s32.totalorder %s24, 0
      %s27 = sadd.s32 %s26, 1
      %s28 = scalar_select %p25, %s26, %s27
      %p31 = pneg %p25
      %p32 = scmp.eq.s32.totalorder %s16, 1
      %p33 = por %p31, %p32
      %p34 = scmp.ne.s32.totalorder %s26, %s29
      %p35 = scmp.eq.s32.totalorder %s16, 0
      %p36 = por %p34, %p35
      %p37 = scmp.ne.s32.totalorder %s26, %s29
      %p38 = scmp.eq.s32.totalorder %s21, 1
      %p39 = por %p37, %p38
      %p40 = scmp.ne.s32.totalorder %s29, %s30
      %p41 = scmp.eq.s32.totalorder %s21, 0
      %p42 = por %p40, %p41
      %p43 = scmp.ne.s32.totalorder %s29, %s30
      %p44 = scmp.eq.s32.totalorder %s22, 1
      %p45 = por %p43, %p44
      %p47 = scmp.ne.s32.totalorder %s30, %s46
      %p48 = scmp.eq.s32.totalorder %s22, 0
      %p49 = por %p47, %p48
      %s51 = sadd.s32 %s50, 1
      %p54 = scmp.eq.s32.totalorder %s16, 1
      %p55 = scmp.ne.s32.totalorder %s50, %s52
      %p56 = scmp.eq.s32.totalorder %s16, 0
      %p57 = por %p55, %p56
      %p58 = scmp.ne.s32.totalorder %s50, %s52
      %p59 = scmp.eq.s32.totalorder %s21, 1
      %p60 = por %p58, %p59
      %p61 = scmp.ne.s32.totalorder %s52, %s53
      %p62 = scmp.eq.s32.totalorder %s21, 0
      %p63 = por %p61, %p62
      %p64 = scmp.ne.s32.totalorder %s52, %s53
      %p65 = scmp.eq.s32.totalorder %s22, 1
      %p66 = por %p64, %p65
      %p68 = scmp.ne.s32.totalorder %s53, %s67
      %p69 = scmp.eq.s32.totalorder %s22, 0
      %p70 = por %p68, %p69
      %s72 = sadd.s32 %s71, 1
      %p75 = scmp.eq.s32.totalorder %s16, 1
      %p76 = scmp.ne.s32.totalorder %s71, %s73
      %p77 = scmp.eq.s32.totalorder %s16, 0
      %p78 = por %p76, %p77
      %p79 = scmp.ne.s32.totalorder %s71, %s73
      %p80 = scmp.eq.s32.totalorder %s21, 1
      %p81 = por %p79, %p80
      %p82 = scmp.ne.s32.totalorder %s73, %s74
      %p83 = scmp.eq.s32.totalorder %s21, 0
      %p84 = por %p82, %p83
      %p85 = scmp.ne.s32.totalorder %s73, %s74
      %p86 = scmp.eq.s32.totalorder %s22, 1
      %p87 = por %p85, %p86
      %p89 = scmp.ne.s32.totalorder %s74, %s88
      %p90 = scmp.eq.s32.totalorder %s22, 0
      %p91 = por %p89, %p90
      %s92 = ssub.s32 %s16, %s23
      %p93 = scmp.eq.s32.totalorder %s92, 0
      %s95 = sadd.s32 %s94, 1
      %s96 = scalar_select %p93, %s94, %s95
      %p99 = pneg %p93
      %p100 = scmp.eq.s32.totalorder %s16, 1
      %p101 = por %p99, %p100
      %p102 = scmp.ne.s32.totalorder %s94, %s97
      %p103 = scmp.eq.s32.totalorder %s16, 0
      %p104 = por %p102, %p103
      %p105 = scmp.ne.s32.totalorder %s94, %s97
      %p106 = scmp.eq.s32.totalorder %s21, 1
      %p107 = por %p105, %p106
      %p108 = scmp.ne.s32.totalorder %s97, %s98
      %p109 = scmp.eq.s32.totalorder %s21, 0
      %p110 = por %p108, %p109
      %p111 = scmp.ne.s32.totalorder %s97, %s98
      %p112 = scmp.eq.s32.totalorder %s22, 1
      %p113 = por %p111, %p112
      %p115 = scmp.ne.s32.totalorder %s98, %s114
      %p116 = scmp.eq.s32.totalorder %s22, 0
      %p117 = por %p115, %p116
      %p118 = scmp.le.s32.totalorder 1, %s16
      %p119 = scmp.lt.s32.totalorder %s16, 3
      %p120 = pnand %p118, %p119
      %p121 = pneg %p120
      // Predicated region
      $region9: #{tpu_custom_call.1} parent=5 // pred_check
        _
      $region10: #{tpu_custom_call.1} parent=5 // pred_check_branch
        %123 = sbr.rel (%p120) target = $region12
      $region11: #{tpu_custom_call.1} parent=5 // pred_region
        %s124 = ssub.s32 %s16, 1
        // Predicated region
        $region13: #{tpu_custom_call.1} parent=11 // pred_check
          %p125 = pneg %p63
        $region14: #{tpu_custom_call.1} parent=11 // pred_check_branch
          %127 = sbr.rel (%p125) target = $region16
        $region15: #{tpu_custom_call.1} parent=11 // pred_region
          %s129 = ssub.s32 2048, 2048
          %130 = vsyncadd [#allocation6], %s129
          %s131 = sshll.u32 [#allocation5], 4
          %s132 = int_to_ptr.vmem [resolvable:$true] %s131
          %137 = dma.hbm_to_vmem [thread:$0]  %s1, 2048, %s132, [#allocation6], 128, 128, 8
        $region16: #{tpu_custom_call.1} parent=11 // pred_fallthru
          _
        // Predicated region
        $region17: #{tpu_custom_call.1} parent=11 // pred_check
          %p138 = pneg %p84
        $region18: #{tpu_custom_call.1} parent=11 // pred_check_branch
          %140 = sbr.rel (%p138) target = $region20
        $region19: #{tpu_custom_call.1} parent=11 // pred_region
          %s142 = ssub.s32 16, 16
          %143 = vsyncadd [#allocation6], %s142
          %s145 = sshll.u32 [#allocation7], 4
          %s146 = int_to_ptr.vmem [resolvable:$true] %s145
          %148 = dma.hbm_to_vmem [thread:$0]  %s2, 16, %s146, [#allocation6]
        $region20: #{tpu_custom_call.1} parent=11 // pred_fallthru
          _
      $region12: #{tpu_custom_call.1} parent=5 // pred_fallthru
        _
      %p149 = scmp.lt.s32.totalorder %s16, 2
      // Predicated region
      $region21: #{tpu_custom_call.1} parent=5 // pred_check
        %p150 = pneg %p149
      $region22: #{tpu_custom_call.1} parent=5 // pred_check_branch
        %152 = sbr.rel (%p150) target = $region24
      $region23: #{tpu_custom_call.1} parent=5 // pred_region
        // Predicated region
        $region25: #{tpu_custom_call.1} parent=23 // pred_check
          %p153 = pneg %p36
        $region26: #{tpu_custom_call.1} parent=23 // pred_check_branch
          %155 = sbr.rel (%p153) target = $region28
        $region27: #{tpu_custom_call.1} parent=23 // pred_region
          %s156 = sand.u32 %s26, 1
          %s157 = scalar_lea.sflag [#allocation3], %s156
          %s158 = sand.u32 %s26, 1
          %s159 = smul.addr %s158, 128
          %s160 = scalar_lea.vmem [#allocation2], %s159
          %s161 = smul.u32 16, %s16
          %s163 = ssub.s32 2048, 2048
          %164 = vsyncadd %s157, %s163
          %s165 = smul.addr %s161, 128
          %s166 = scalar_lea.hbm %s0, %s165
          %s167 = sshll.u32 %s160, 4
          %s168 = int_to_ptr.vmem [resolvable:$true] %s167
          %173 = dma.hbm_to_vmem [thread:$0]  %s166, 2048, %s168, %s157, 128, 128, 8
        $region28: #{tpu_custom_call.1} parent=23 // pred_fallthru
          _
      $region24: #{tpu_custom_call.1} parent=5 // pred_fallthru
        _
      %p174 = scmp.le.s32.totalorder 1, %s16
      %p175 = scmp.lt.s32.totalorder %s16, 3
      %p176 = pnand %p174, %p175
      %p177 = pneg %p176
      // Predicated region
      $region29: #{tpu_custom_call.1} parent=5 // pred_check
        _
      $region30: #{tpu_custom_call.1} parent=5 // pred_check_branch
        %179 = sbr.rel (%p176) target = $region32
      $region31: #{tpu_custom_call.1} parent=5 // pred_region
        %s180 = ssub.s32 %s16, 1
        %s181 = sand.u32 %s29, 1
        %s182 = scalar_lea.sflag [#allocation3], %s181
        %s183 = sand.u32 %s29, 1
        %s184 = smul.addr %s183, 128
        %s185 = scalar_lea.vmem [#allocation2], %s184
        // Predicated region
        $region33: #{tpu_custom_call.1} parent=31 // pred_check
          %p186 = pneg %p42
        $region34: #{tpu_custom_call.1} parent=31 // pred_check_branch
          %188 = sbr.rel (%p186) target = $region36
        $region35: #{tpu_custom_call.1} parent=31 // pred_region
          %189 = dma.done %s182, 2048
        $region36: #{tpu_custom_call.1} parent=31 // pred_fallthru
          _
        // Predicated region
        $region37: #{tpu_custom_call.1} parent=31 // pred_check
          %p190 = pneg %p63
        $region38: #{tpu_custom_call.1} parent=31 // pred_check_branch
          %192 = sbr.rel (%p190) target = $region40
        $region39: #{tpu_custom_call.1} parent=31 // pred_region
          %193 = dma.done [#allocation6], 2048
        $region40: #{tpu_custom_call.1} parent=31 // pred_fallthru
          _
        // Predicated region
        $region41: #{tpu_custom_call.1} parent=31 // pred_check
          %p194 = pneg %p84
        $region42: #{tpu_custom_call.1} parent=31 // pred_check_branch
          %196 = sbr.rel (%p194) target = $region44
        $region43: #{tpu_custom_call.1} parent=31 // pred_region
          %197 = dma.done [#allocation6], 16
        $region44: #{tpu_custom_call.1} parent=31 // pred_fallthru
          _
        %s198 = sand.u32 %s29, 1
        %s199 = scalar_lea.sflag [#allocation3], %s198
        %s200 = sand.u32 %s29, 1
        %s201 = smul.addr %s200, 128
        %s202 = scalar_lea.vmem [#allocation2], %s201
        %p203 = pneg %p42
        %p204 = pneg %p39
        %p205 = pneg %p63
        %p206 = pneg %p60
        %p207 = pneg %p84
        %p208 = pneg %p81
        %p209 = pneg %p110
        %p210 = pneg %p107
        %s211 = sand.u32 %s97, 1
        %s212 = scalar_lea.sflag [#allocation4], %s211
        %s213 = sand.u32 %s97, 1
        %s214 = smul.addr %s213, 128
        %s215 = scalar_lea.vmem [#allocation8], %s214
        %s216 = smul.u32 16, %s21
        %s217 = smul.u32 16, %s21
        %v218 = vld [vmem:[%s185] sm:$0xff]
        %v219 = vld [vmem:[%s185 + $0x8] sm:$0xff]
        %v220 = vld [vmem:[%s185 + $0x10] sm:$0xff]
        %v221 = vld [vmem:[%s185 + $0x18] sm:$0xff]
        %v222 = vld [vmem:[%s185 + $0x20] sm:$0xff]
        %v223 = vld [vmem:[%s185 + $0x28] sm:$0xff]
        %v224 = vld [vmem:[%s185 + $0x30] sm:$0xff]
        %v225 = vld [vmem:[%s185 + $0x38] sm:$0xff]
        %v226 = vld [vmem:[%s185 + $0x40] sm:$0xff]
        %v227 = vld [vmem:[%s185 + $0x48] sm:$0xff]
        %v228 = vld [vmem:[%s185 + $0x50] sm:$0xff]
        %v229 = vld [vmem:[%s185 + $0x58] sm:$0xff]
        %v230 = vld [vmem:[%s185 + $0x60] sm:$0xff]
        %v231 = vld [vmem:[%s185 + $0x68] sm:$0xff]
        %v232 = vld [vmem:[%s185 + $0x70] sm:$0xff]
        %v233 = vld [vmem:[%s185 + $0x78] sm:$0xff]
        %v234 = vld [vmem:[#allocation5] sm:$0xff]
        %v235 = vld [vmem:[#allocation5 + $0x8] sm:$0xff]
        %v236 = vld [vmem:[#allocation5 + $0x10] sm:$0xff]
        %v237 = vld [vmem:[#allocation5 + $0x18] sm:$0xff]
        %v238 = vld [vmem:[#allocation5 + $0x20] sm:$0xff]
        %v239 = vld [vmem:[#allocation5 + $0x28] sm:$0xff]
        %v240 = vld [vmem:[#allocation5 + $0x30] sm:$0xff]
        %v241 = vld [vmem:[#allocation5 + $0x38] sm:$0xff]
        %v242 = vld [vmem:[#allocation5 + $0x40] sm:$0xff]
        %v243 = vld [vmem:[#allocation5 + $0x48] sm:$0xff]
        %v244 = vld [vmem:[#allocation5 + $0x50] sm:$0xff]
        %v245 = vld [vmem:[#allocation5 + $0x58] sm:$0xff]
        %v246 = vld [vmem:[#allocation5 + $0x60] sm:$0xff]
        %v247 = vld [vmem:[#allocation5 + $0x68] sm:$0xff]
        %v248 = vld [vmem:[#allocation5 + $0x70] sm:$0xff]
        %v249 = vld [vmem:[#allocation5 + $0x78] sm:$0xff]
        %v250 = vld [vmem:[#allocation7] sm:$0x1]
        %v252 = vlaneseq
        %v253 = vshrl.u32 %v252, 7
        %v254 = vsub.s32 0, %v253
        %v255 = vrot.slane %v250, %v254
        %257 = vmatprep.subr.mxu0 0.0
        %258 = vmatpush1.msra.mxu0 %v234
        %259 = vmatprep.subr.mxu0 0.0
        %260 = vmatpush1.msra.mxu0 %v235
        %261 = vmatprep.subr.mxu0 0.0
        %262 = vmatpush1.msra.mxu0 %v236
        %263 = vmatprep.subr.mxu0 0.0
        %264 = vmatpush1.msra.mxu0 %v237
        %265 = vmatprep.subr.mxu0 0.0
        %266 = vmatpush1.msra.mxu0 %v238
        %267 = vmatprep.subr.mxu0 0.0
        %268 = vmatpush1.msra.mxu0 %v239
        %269 = vmatprep.subr.mxu0 0.0
        %270 = vmatpush1.msra.mxu0 %v240
        %271 = vmatprep.subr.mxu0 0.0
        %272 = vmatpush1.msra.mxu0 %v241
        %273 = vmatprep.subr.mxu0 0.0
        %274 = vmatpush1.msra.mxu0 %v242
        %275 = vmatprep.subr.mxu0 0.0
        %276 = vmatpush1.msra.mxu0 %v243
        %277 = vmatprep.subr.mxu0 0.0
        %278 = vmatpush1.msra.mxu0 %v244
        %279 = vmatprep.subr.mxu0 0.0
        %280 = vmatpush1.msra.mxu0 %v245
        %281 = vmatprep.subr.mxu0 0.0
        %282 = vmatpush1.msra.mxu0 %v246
        %283 = vmatprep.subr.mxu0 0.0
        %284 = vmatpush1.msra.mxu0 %v247
        %285 = vmatprep.subr.mxu0 0.0
        %286 = vmatpush1.msra.mxu0 %v248
        %287 = vmatprep.subr.mxu0 0.0
        %288 = vmatpush1.msra.mxu0 %v249
        %289 = vmatprep.subr.mxu0 0.0
        %290 = vmatpush1.msra.mxu0 0.0
        %291 = vmatprep.subr.mxu0 0.0
        %292 = vmatpush1.msra.mxu0 0.0
        %293 = vmatprep.subr.mxu0 0.0
        %294 = vmatpush1.msra.mxu0 0.0
        %295 = vmatprep.subr.mxu0 0.0
        %296 = vmatpush1.msra.mxu0 0.0
        %297 = vmatprep.subr.mxu0 0.0
        %298 = vmatpush1.msra.mxu0 0.0
        %299 = vmatprep.subr.mxu0 0.0
        %300 = vmatpush1.msra.mxu0 0.0
        %301 = vmatprep.subr.mxu0 0.0
        %302 = vmatpush1.msra.mxu0 0.0
        %303 = vmatprep.subr.mxu0 0.0
        %304 = vmatpush1.msra.mxu0 0.0
        %305 = vmatprep.subr.mxu0 0.0
        %306 = vmatpush1.msra.mxu0 0.0
        %307 = vmatprep.subr.mxu0 0.0
        %308 = vmatpush1.msra.mxu0 0.0
        %309 = vmatprep.subr.mxu0 0.0
        %310 = vmatpush1.msra.mxu0 0.0
        %311 = vmatprep.subr.mxu0 0.0
        %312 = vmatpush1.msra.mxu0 0.0
        %313 = vmatprep.subr.mxu0 0.0
        %314 = vmatpush1.msra.mxu0 0.0
        %315 = vmatprep.subr.mxu0 0.0
        %316 = vmatpush1.msra.mxu0 0.0
        %317 = vmatprep.subr.mxu0 0.0
        %318 = vmatpush1.msra.mxu0 0.0
        %319 = vmatprep.subr.mxu0 0.0
        %320 = vmatpush1.msra.mxu0 0.0
        %321 = vmatprep.mubr.f32.mxu0 0.0
        %322 = vmatmul.mubr.f32.gmra.mrb[0].mxu0 %v218
        %v323 = vpop.f32.mrb[0].mxu0
        %v324 = vadd.f32 %v255, %v323
        %v325 = vpop.f32.mrb[0].mxu0
        %326 = vmatprep.mubr.f32.mxu0 0.0
        %327 = vmatmul.mubr.f32.gmra.mrb[0].mxu0 %v219
        %v328 = vpop.f32.mrb[0].mxu0
        %v329 = vadd.f32 %v255, %v328
        %v330 = vpop.f32.mrb[0].mxu0
        %331 = vmatprep.mubr.f32.mxu0 0.0
        %332 = vmatmul.mubr.f32.gmra.mrb[0].mxu0 %v220
        %v333 = vpop.f32.mrb[0].mxu0
        %v334 = vadd.f32 %v255, %v333
        %v335 = vpop.f32.mrb[0].mxu0
        %336 = vmatprep.mubr.f32.mxu0 0.0
        %337 = vmatmul.mubr.f32.gmra.mrb[0].mxu0 %v221
        %v338 = vpop.f32.mrb[0].mxu0
        %v339 = vadd.f32 %v255, %v338
        %v340 = vpop.f32.mrb[0].mxu0
        %341 = vmatprep.mubr.f32.mxu0 0.0
        %342 = vmatmul.mubr.f32.gmra.mrb[0].mxu0 %v222
        %v343 = vpop.f32.mrb[0].mxu0
        %v344 = vadd.f32 %v255, %v343
        %v345 = vpop.f32.mrb[0].mxu0
        %346 = vmatprep.mubr.f32.mxu0 0.0
        %347 = vmatmul.mubr.f32.gmra.mrb[0].mxu0 %v223
        %v348 = vpop.f32.mrb[0].mxu0
        %v349 = vadd.f32 %v255, %v348
        %v350 = vpop.f32.mrb[0].mxu0
        %351 = vmatprep.mubr.f32.mxu0 0.0
        %352 = vmatmul.mubr.f32.gmra.mrb[0].mxu0 %v224
        %v353 = vpop.f32.mrb[0].mxu0
        %v354 = vadd.f32 %v255, %v353
        %v355 = vpop.f32.mrb[0].mxu0
        %356 = vmatprep.mubr.f32.mxu0 0.0
        %357 = vmatmul.mubr.f32.gmra.mrb[0].mxu0 %v225
        %v358 = vpop.f32.mrb[0].mxu0
        %v359 = vadd.f32 %v255, %v358
        %v360 = vpop.f32.mrb[0].mxu0
        %361 = vmatprep.mubr.f32.mxu0 0.0
        %362 = vmatmul.mubr.f32.gmra.mrb[0].mxu0 %v226
        %v363 = vpop.f32.mrb[0].mxu0
        %v364 = vadd.f32 %v255, %v363
        %v365 = vpop.f32.mrb[0].mxu0
        %366 = vmatprep.mubr.f32.mxu0 0.0
        %367 = vmatmul.mubr.f32.gmra.mrb[0].mxu0 %v227
        %v368 = vpop.f32.mrb[0].mxu0
        %v369 = vadd.f32 %v255, %v368
        %v370 = vpop.f32.mrb[0].mxu0
        %371 = vmatprep.mubr.f32.mxu0 0.0
        %372 = vmatmul.mubr.f32.gmra.mrb[0].mxu0 %v228
        %v373 = vpop.f32.mrb[0].mxu0
        %v374 = vadd.f32 %v255, %v373
        %v375 = vpop.f32.mrb[0].mxu0
        %376 = vmatprep.mubr.f32.mxu0 0.0
        %377 = vmatmul.mubr.f32.gmra.mrb[0].mxu0 %v229
        %v378 = vpop.f32.mrb[0].mxu0
        %v379 = vadd.f32 %v255, %v378
        %v380 = vpop.f32.mrb[0].mxu0
        %381 = vmatprep.mubr.f32.mxu0 0.0
        %382 = vmatmul.mubr.f32.gmra.mrb[0].mxu0 %v230
        %v383 = vpop.f32.mrb[0].mxu0
        %v384 = vadd.f32 %v255, %v383
        %v385 = vpop.f32.mrb[0].mxu0
        %386 = vmatprep.mubr.f32.mxu0 0.0
        %387 = vmatmul.mubr.f32.gmra.mrb[0].mxu0 %v231
        %v388 = vpop.f32.mrb[0].mxu0
        %v389 = vadd.f32 %v255, %v388
        %v390 = vpop.f32.mrb[0].mxu0
        %391 = vmatprep.mubr.f32.mxu0 0.0
        %392 = vmatmul.mubr.f32.gmra.mrb[0].mxu0 %v232
        %v393 = vpop.f32.mrb[0].mxu0
        %v394 = vadd.f32 %v255, %v393
        %v395 = vpop.f32.mrb[0].mxu0
        %396 = vmatprep.mubr.f32.mxu0 0.0
        %397 = vmatmul.mubr.f32.gmra.mrb[0].mxu0 %v233
        %v398 = vpop.f32.mrb[0].mxu0
        %v399 = vadd.f32 %v255, %v398
        %v400 = vpop.f32.mrb[0].mxu0
        %401 = vdwg.mxu0
        %v402 = vmax.f32 %v324, 0.0
        %v403 = vmax.f32 %v329, 0.0
        %v404 = vmax.f32 %v334, 0.0
        %v405 = vmax.f32 %v339, 0.0
        %v406 = vmax.f32 %v344, 0.0
        %v407 = vmax.f32 %v349, 0.0
        %v408 = vmax.f32 %v354, 0.0
        %v409 = vmax.f32 %v359, 0.0
        %v410 = vmax.f32 %v364, 0.0
        %v411 = vmax.f32 %v369, 0.0
        %v412 = vmax.f32 %v374, 0.0
        %v413 = vmax.f32 %v379, 0.0
        %v414 = vmax.f32 %v384, 0.0
        %v415 = vmax.f32 %v389, 0.0
        %v416 = vmax.f32 %v394, 0.0
        %v417 = vmax.f32 %v399, 0.0
        %418 = vst [vmem:[%s215] sm:$0xff] %v402
        %419 = vst [vmem:[%s215 + $0x8] sm:$0xff] %v403
        %420 = vst [vmem:[%s215 + $0x10] sm:$0xff] %v404
        %421 = vst [vmem:[%s215 + $0x18] sm:$0xff] %v405
        %422 = vst [vmem:[%s215 + $0x20] sm:$0xff] %v406
        %423 = vst [vmem:[%s215 + $0x28] sm:$0xff] %v407
        %424 = vst [vmem:[%s215 + $0x30] sm:$0xff] %v408
        %425 = vst [vmem:[%s215 + $0x38] sm:$0xff] %v409
        %426 = vst [vmem:[%s215 + $0x40] sm:$0xff] %v410
        %427 = vst [vmem:[%s215 + $0x48] sm:$0xff] %v411
        %428 = vst [vmem:[%s215 + $0x50] sm:$0xff] %v412
        %429 = vst [vmem:[%s215 + $0x58] sm:$0xff] %v413
        %430 = vst [vmem:[%s215 + $0x60] sm:$0xff] %v414
        %431 = vst [vmem:[%s215 + $0x68] sm:$0xff] %v415
        %432 = vst [vmem:[%s215 + $0x70] sm:$0xff] %v416
        %433 = vst [vmem:[%s215 + $0x78] sm:$0xff] %v417
        %s434 = sand.u32 %s97, 1
        %s435 = scalar_lea.sflag [#allocation4], %s434
        %s436 = sand.u32 %s97, 1
        %s437 = smul.addr %s436, 128
        %s438 = scalar_lea.vmem [#allocation8], %s437
        // Predicated region
        $region45: #{tpu_custom_call.1} parent=31 // pred_check
          %p439 = pneg %p107
        $region46: #{tpu_custom_call.1} parent=31 // pred_check_branch
          %441 = sbr.rel (%p439) target = $region48
        $region47: #{tpu_custom_call.1} parent=31 // pred_region
          %s442 = smul.u32 16, %s21
          %s444 = ssub.s32 2048, 2048
          %445 = vsyncadd %s435, %s444
          %s446 = smul.addr %s442, 128
          %s447 = scalar_lea.hbm %s3, %s446
          %s448 = sshll.u32 %s438, 4
          %s449 = int_to_ptr.vmem [resolvable:$true] %s448
          %454 = dma.vmem_to_hbm [thread:$0]  %s449, 2048, %s447, %s435, 128, 128, 8
        $region48: #{tpu_custom_call.1} parent=31 // pred_fallthru
          _
      $region32: #{tpu_custom_call.1} parent=5 // pred_fallthru
        _
      %p455 = scmp.le.s32.totalorder 2, %s16
      // Predicated region
      $region49: #{tpu_custom_call.1} parent=5 // pred_check
        %p456 = pneg %p455
      $region50: #{tpu_custom_call.1} parent=5 // pred_check_branch
        %458 = sbr.rel (%p456) target = $region52
      $region51: #{tpu_custom_call.1} parent=5 // pred_region
        %s459 = ssub.s32 %s16, 2
        // Predicated region
        $region53: #{tpu_custom_call.1} parent=51 // pred_check
          %p460 = pneg %p113
        $region54: #{tpu_custom_call.1} parent=51 // pred_check_branch
          %462 = sbr.rel (%p460) target = $region56
        $region55: #{tpu_custom_call.1} parent=51 // pred_region
          %s463 = sand.u32 %s98, 1
          %s464 = scalar_lea.sflag [#allocation4], %s463
          %s465 = sand.u32 %s98, 1
          %s466 = smul.addr %s465, 128
          %s467 = scalar_lea.vmem [#allocation8], %s466
          %468 = dma.done %s464, 2048
        $region56: #{tpu_custom_call.1} parent=51 // pred_fallthru
          _
      $region52: #{tpu_custom_call.1} parent=5 // pred_fallthru
        _
    $region6: #{tpu_custom_call.1} parent=1 // loop_footer
      %s20 = sadd.s32 1, %s16
    $region7: #{tpu_custom_call.1} parent=1 // loop_footer_branch
      %15 = sbr.rel target = $region3
    $region8: #{tpu_custom_call.1} parent=1 // loop_exit
      _
    %469 = vsyncpa [#allocation3], 1
    %s470 = scalar_lea.sflag [#allocation3], 1
    %471 = vsyncpa %s470, 1
    %472 = vsyncpa [#allocation6], 1
    %473 = vsyncpa [#allocation4], 1
    %s474 = scalar_lea.sflag [#allocation4], 1
    %475 = vsyncpa %s474, 1

</llo_original>
